<compile_context>
chip_gen: v7x
topology: tpu7x:2x2x1
jax: 0.10.0
libtpu: 0.0.40
codegen_flags: <defaults>
</compile_context>

<pallas_src>
import jax
import jax.numpy as jnp
from jax.experimental import pallas as pl
from jax.experimental.pallas import tpu as pltpu


_SQRT_HALF = 0.7071067811865476


def _erf(x):
    # Abramowitz & Stegun 7.1.26 rational approximation (max abs err ~1.5e-7).
    # Built only from exp / mul / add / where so it always lowers on Mosaic.
    a1, a2, a3, a4, a5 = (0.254829592, -0.284496736, 1.421413741,
                          -1.453152027, 1.061405429)
    p = 0.3275911
    ax = jnp.abs(x)
    t = 1.0 / (1.0 + p * ax)
    poly = ((((a5 * t + a4) * t + a3) * t + a2) * t + a1) * t
    y = 1.0 - poly * jnp.exp(-(ax * ax))
    return jnp.where(x < 0.0, -y, y)


def _gelu_exact(x):
    # PyTorch nn.GELU() default ('none' approximation, i.e. erf-based).
    return 0.5 * x * (1.0 + _erf(x * _SQRT_HALF))


def _make_dino_head_kernel(num_mlp_layers: int, eps: float):
    """Builds the fused DINOHead kernel for a fixed number of MLP Linear layers."""
    eps_sq = eps * eps

    def kernel(*args):
        x_ref = args[0]
        mlp_refs = args[1:1 + 2 * num_mlp_layers]
        vt_ref, scale_ref, out_ref, z_ref = args[1 + 2 * num_mlp_layers:]

        # --- MLP + L2-normalize: once per batch tile, cached in bf16 VMEM scratch ---
        @pl.when(pl.program_id(1) == 0)
        def _():
            h = x_ref[...].astype(jnp.float32)                        # (TB, in_dim)
            for i in range(num_mlp_layers):
                w = mlp_refs[2 * i][...]                              # bf16 (d_in, d_out)
                b = mlp_refs[2 * i + 1][...]                          # f32  (1, d_out)
                # bf16 operands, f32 accumulation on the MXU.
                h = jnp.dot(h.astype(jnp.bfloat16), w,
                            preferred_element_type=jnp.float32) + b
                if i < num_mlp_layers - 1:
                    h = _gelu_exact(h)
            # F.normalize(dim=-1, p=2): x / max(||x||_2, eps)  ==  x * rsqrt(max(ss, eps^2))
            ss = jnp.sum(h * h, axis=-1, keepdims=True)               # (TB, 1)
            inv_nrm = jax.lax.rsqrt(jnp.maximum(ss, eps_sq))
            z_ref[...] = (h * inv_nrm).astype(z_ref.dtype)            # bf16 (TB, K)

        # --- weight-normalized last layer on the current out_dim tile ---
        # scale = g / ||v||_row was precomputed in the wrapper; apply post-matmul.
        acc = jnp.dot(z_ref[...], vt_ref[...],
                      preferred_element_type=jnp.float32)             # (TB, TO) f32
        out_ref[...] = (acc * scale_ref[...]).astype(out_ref.dtype)

    return kernel


def _auto_tile(n: int, cap: int, align: int) -> int:
    """Largest divisor of n that is <= cap and a multiple of align (fallback: n)."""
    best = None
    d = align
    limit = min(n, cap)
    while d <= limit:
        if n % d == 0:
            best = d
        d += align
    return best if best is not None else n


def _padded_bytes(shape, dtype) -> int:
    """Rough VMEM footprint of one buffer with (sublane, lane) layout padding."""
    itemsize = jnp.dtype(dtype).itemsize
    s = list(shape)
    if s:
        s[-1] = -(-s[-1] // 128) * 128
    if len(s) >= 2:
        sub = max(8, 32 // itemsize)          # 8 rows for f32, 16 for bf16
        s[-2] = -(-s[-2] // sub) * sub
    n = 1
    for d in s:
        n *= int(d)
    return n * itemsize


def dino_head_forward(x, mlp_params, last_v, last_g, *,
                      block_b=None, block_out=None, vmem_limit_bytes=None):
    """Pallas TPU forward of DINOHead (use_bn=False).

    x:          (B, in_dim)
    mlp_params: list of (W, b) with W in (d_in, d_out) layout and b of shape (d_out,)
    last_v:     (out_dim, bottleneck_dim)  -- weight_norm 'v' (original1)
    last_g:     (out_dim,)                 -- weight_norm 'g' (original0, init = 1)
    """
    B, in_dim = x.shape
    out_dim, bottleneck_dim = last_v.shape

    # Large default tiles: fill the MXU and amortize the per-grid-step overhead.
    # block_b covers the whole batch when possible so the huge last-layer weight
    # is streamed from HBM exactly once.
    if block_b is None:
        block_b = _auto_tile(B, 512, 8)
    if block_out is None:
        block_out = _auto_tile(out_dim, 1024, 128)
    assert B % block_b == 0, "batch must be divisible by block_b"
    assert out_dim % block_out == 0, "out_dim must be divisible by block_out"
    assert block_out % 128 == 0 or block_out == out_dim, \
        "keep output tiles lane-dense (multiple of 128) or full-extent"

    # eps exactly as in the PyTorch forward (1e-6 for float16 inputs, else 1e-12).
    eps = 1e-6 if x.dtype == jnp.float16 else 1e-12
    num_mlp_layers = len(mlp_params)

    # Hoisted weight normalization: per-output-column scale computed once in f32,
    # and the 'v' matrix streamed lane-dense in bf16 as (K, out_dim).
    v32 = last_v.astype(jnp.float32)
    vnorm = jnp.sqrt(jnp.sum(v32 * v32, axis=-1))                     # (out_dim,)
    scale = (last_g.astype(jnp.float32) / vnorm).reshape(1, out_dim)  # (1, out_dim) f32
    vt = jnp.transpose(last_v).astype(jnp.bfloat16)                   # (K, out_dim) bf16

    flat_mlp = []
    in_specs = [pl.BlockSpec((block_b, in_dim), lambda b, o: (b, 0))]
    for w, bvec in mlp_params:
        w_bf = w.astype(jnp.bfloat16)
        b2d = bvec.astype(jnp.float32).reshape(1, -1)
        flat_mlp.extend((w_bf, b2d))
        # Full-array blocks with constant index_map -> fetched once, stay resident.
        in_specs.append(pl.BlockSpec(w_bf.shape, lambda b, o: (0, 0)))
        in_specs.append(pl.BlockSpec(b2d.shape, lambda b, o: (0, 0)))
    in_specs.append(pl.BlockSpec((bottleneck_dim, block_out), lambda b, o: (0, o)))
    in_specs.append(pl.BlockSpec((1, block_out), lambda b, o: (0, o)))

    grid = (B // block_b, out_dim // block_out)

    # VMEM plan sized from the actual buffers (double-buffered pipeline inputs/outputs
    # + bf16 z scratch), instead of a hardcoded cap.
    est = 2 * _padded_bytes((block_b, in_dim), x.dtype)
    for w, bvec in mlp_params:
        est += 2 * _padded_bytes(w.shape, jnp.bfloat16)
        est += 2 * _padded_bytes((1, bvec.shape[-1]), jnp.float32)
    est += 2 * _padded_bytes((bottleneck_dim, block_out), jnp.bfloat16)
    est += 2 * _padded_bytes((1, block_out), jnp.float32)
    est += 2 * _padded_bytes((block_b, block_out), x.dtype)
    est += _padded_bytes((block_b, bottleneck_dim), jnp.bfloat16)
    if vmem_limit_bytes is None:
        vmem_limit_bytes = int(min(max(est + est // 2 + (4 << 20), 32 << 20), 100 << 20))

    return pl.pallas_call(
        _make_dino_head_kernel(num_mlp_layers, eps),
        out_shape=jax.ShapeDtypeStruct((B, out_dim), x.dtype),
        grid_spec=pltpu.PrefetchScalarGridSpec(
            num_scalar_prefetch=0,
            grid=grid,
            in_specs=in_specs,
            out_specs=pl.BlockSpec((block_b, block_out), lambda b, o: (b, o)),
            scratch_shapes=[pltpu.VMEM((block_b, bottleneck_dim), jnp.bfloat16)],
        ),
        compiler_params=pltpu.CompilerParams(
            # Batch tiles shard across TensorCores; out_dim is the inner streaming
            # axis that reuses the cached bottleneck scratch (must stay sequential).
            dimension_semantics=("parallel", "arbitrary"),
            vmem_limit_bytes=vmem_limit_bytes,
        ),
    )(x, *flat_mlp, vt, scale)


def dino_head_ref(x, mlp_params, last_v, last_g):
    """Pure-JAX f32 reference mirroring the PyTorch DINOHead.forward."""
    h = x.astype(jnp.float32)
    for i, (w, b) in enumerate(mlp_params):
        h = jnp.dot(h, w, precision=jax.lax.Precision.HIGHEST) + b
        if i < len(mlp_params) - 1:
            h = jax.nn.gelu(h, approximate=False)   # exact (erf) GELU, as nn.GELU()
    eps = 1e-6 if x.dtype == jnp.float16 else 1e-12
    nrm = jnp.sqrt(jnp.sum(h * h, axis=-1, keepdims=True))
    h = h / jnp.maximum(nrm, eps)
    w_eff = last_g.reshape(-1, 1) * last_v / jnp.sqrt(
        jnp.sum(last_v * last_v, axis=-1, keepdims=True))
    return jnp.dot(h, w_eff.T, precision=jax.lax.Precision.HIGHEST).astype(x.dtype)


if __name__ == "__main__":
    # Synthetic, deterministic DINOHead config:
    #   num_layers=3, use_bn=False, in_dim=64, hidden_dim=128,
    #   bottleneck_dim=64, out_dim=512, batch=16
    in_dim, hidden_dim, bottleneck_dim, out_dim = 64, 128, 64, 512
    batch = 16

    key = jax.random.PRNGKey(0)
    keys = jax.random.split(key, 8)

    x = jax.random.normal(keys[0], (batch, in_dim), dtype=jnp.float32)

    # MLP parameters stored as (d_in, d_out) so the forward is x @ W + b.
    w1 = 0.02 * jax.random.normal(keys[1], (in_dim, hidden_dim), dtype=jnp.float32)
    b1 = 0.01 * jax.random.normal(keys[2], (hidden_dim,), dtype=jnp.float32)
    w2 = 0.02 * jax.random.normal(keys[3], (hidden_dim, hidden_dim), dtype=jnp.float32)
    b2 = 0.01 * jax.random.normal(keys[4], (hidden_dim,), dtype=jnp.float32)
    w3 = 0.02 * jax.random.normal(keys[5], (hidden_dim, bottleneck_dim), dtype=jnp.float32)
    b3 = 0.01 * jax.random.normal(keys[6], (bottleneck_dim,), dtype=jnp.float32)
    mlp_params = [(w1, b1), (w2, b2), (w3, b3)]

    # Weight-normalized last layer: v (out_dim, bottleneck_dim), g filled with 1
    # as in the module's __init__ (original0.data.fill_(1)).
    last_v = jax.random.normal(keys[7], (out_dim, bottleneck_dim), dtype=jnp.float32)
    last_g = jnp.ones((out_dim,), dtype=jnp.float32)

    # Small explicit tiles here so the test exercises the multi-tile grid
    # (z caching at o==0, reuse at o>0, multiple batch tiles).  Production use
    # relies on the much larger auto-selected defaults.
    out = dino_head_forward(x, mlp_params, last_v, last_g,
                            block_b=8, block_out=256)
    out = jax.block_until_ready(out)

    ref = dino_head_ref(x, mlp_params, last_v, last_g)
    assert out.shape == (batch, out_dim)
    max_err = float(jnp.max(jnp.abs(out - ref)))
    # bf16 MXU operands with f32 accumulation (+ erf polynomial) -> looser tolerance
    # than the pure-f32 reference.
    assert jnp.allclose(out, ref, rtol=2e-2, atol=5e-3), max_err

    # Also smoke-test the auto-tiled (whole-batch, lane-dense) default path.
    out2 = jax.block_until_ready(dino_head_forward(x, mlp_params, last_v, last_g))
    assert jnp.allclose(out2, ref, rtol=2e-2, atol=5e-3), float(
        jnp.max(jnp.abs(out2 - ref)))

    print("KERNEL_OK")
</pallas_src>

<mosaic_0001>
module attributes {stable_mosaic.version = 11 : i64} {
  func.func @kernel(%arg0: i32, %arg1: i32, %arg2: memref<8x64xf32, #tpu.memory_space<vmem>>, %arg3: memref<64x128xbf16, #tpu.memory_space<vmem>>, %arg4: memref<1x128xf32, #tpu.memory_space<vmem>>, %arg5: memref<128x128xbf16, #tpu.memory_space<vmem>>, %arg6: memref<1x128xf32, #tpu.memory_space<vmem>>, %arg7: memref<128x64xbf16, #tpu.memory_space<vmem>>, %arg8: memref<1x64xf32, #tpu.memory_space<vmem>>, %arg9: memref<64x256xbf16, #tpu.memory_space<vmem>>, %arg10: memref<1x256xf32, #tpu.memory_space<vmem>>, %arg11: memref<8x256xf32, #tpu.memory_space<vmem>>, %arg12: memref<8x64xbf16, #tpu.memory_space<vmem>>) attributes {dimension_semantics = [#tpu.dimension_semantics<parallel>, #tpu.dimension_semantics<arbitrary>], iteration_bounds = array<i64: 2, 2>, scalar_prefetch = 0 : i64, scratch_operands = 1 : i64, tpu.core_type = #tpu.core_type<tc>, window_params = [{transform_indices = @transform_0, window_bounds = array<i64: 8, 64>}, {pipeline_mode = #tpu.pipeline_mode<synchronous>, transform_indices = @transform_1, window_bounds = array<i64: 64, 128>}, {pipeline_mode = #tpu.pipeline_mode<synchronous>, transform_indices = @transform_2, window_bounds = array<i64: 1, 128>}, {pipeline_mode = #tpu.pipeline_mode<synchronous>, transform_indices = @transform_3, window_bounds = array<i64: 128, 128>}, {pipeline_mode = #tpu.pipeline_mode<synchronous>, transform_indices = @transform_4, window_bounds = array<i64: 1, 128>}, {pipeline_mode = #tpu.pipeline_mode<synchronous>, transform_indices = @transform_5, window_bounds = array<i64: 128, 64>}, {pipeline_mode = #tpu.pipeline_mode<synchronous>, transform_indices = @transform_6, window_bounds = array<i64: 1, 64>}, {transform_indices = @transform_7, window_bounds = array<i64: 64, 256>}, {transform_indices = @transform_8, window_bounds = array<i64: 1, 256>}, {transform_indices = @transform_9, window_bounds = array<i64: 8, 256>}]} {
    %c0_i32 = arith.constant 0 : i32
    %0 = arith.cmpi eq, %arg1, %c0_i32 : i32
    %1 = arith.extui %0 : i1 to i32
    %c0_i32_0 = arith.constant 0 : i32
    %2 = arith.cmpi ne, %1, %c0_i32_0 : i32
    scf.if %2 {
      %c0_8 = arith.constant 0 : index
      %c0_9 = arith.constant 0 : index
      %10 = vector.load %arg2[%c0_8, %c0_9] : memref<8x64xf32, #tpu.memory_space<vmem>>, vector<8x64xf32>
      %c0_10 = arith.constant 0 : index
      %c0_11 = arith.constant 0 : index
      %11 = vector.load %arg3[%c0_10, %c0_11] : memref<64x128xbf16, #tpu.memory_space<vmem>>, vector<64x128xbf16>
      %c0_12 = arith.constant 0 : index
      %c0_13 = arith.constant 0 : index
      %12 = vector.load %arg4[%c0_12, %c0_13] : memref<1x128xf32, #tpu.memory_space<vmem>>, vector<1x128xf32>
      %13 = arith.truncf %10 : vector<8x64xf32> to vector<8x64xbf16>
      %cst_14 = arith.constant dense<0.000000e+00> : vector<8x128xf32>
      %14 = tpu.matmul %13, %11, %cst_14 {dimension_numbers = #tpu.dot_dimension_numbers<[1], [0], [0], [1], [0, 0, 1, 1], [], []>} : vector<8x64xbf16>, vector<64x128xbf16>, vector<8x128xf32> -> vector<8x128xf32>
      %15 = vector.broadcast %12 : vector<1x128xf32> to vector<8x128xf32>
      %16 = arith.addf %14, %15 : vector<8x128xf32>
      %cst_15 = arith.constant 5.000000e-01 : f32
      %17 = vector.broadcast %cst_15 : f32 to vector<8x128xf32>
      %18 = arith.mulf %17, %16 : vector<8x128xf32>
      %cst_16 = arith.constant 0.707106769 : f32
      %19 = vector.broadcast %cst_16 : f32 to vector<8x128xf32>
      %20 = arith.mulf %16, %19 : vector<8x128xf32>
      %21 = math.absf %20 : vector<8x128xf32>
      %cst_17 = arith.constant 0.327591091 : f32
      %22 = vector.broadcast %cst_17 : f32 to vector<8x128xf32>
      %23 = arith.mulf %22, %21 : vector<8x128xf32>
      %cst_18 = arith.constant 1.000000e+00 : f32
      %24 = vector.broadcast %cst_18 : f32 to vector<8x128xf32>
      %25 = arith.addf %24, %23 : vector<8x128xf32>
      %cst_19 = arith.constant 1.000000e+00 : f32
      %26 = vector.broadcast %cst_19 : f32 to vector<8x128xf32>
      %27 = arith.divf %26, %25 : vector<8x128xf32>
      %cst_20 = arith.constant 1.06140542 : f32
      %28 = vector.broadcast %cst_20 : f32 to vector<8x128xf32>
      %29 = arith.mulf %28, %27 : vector<8x128xf32>
      %cst_21 = arith.constant -1.45315206 : f32
      %30 = vector.broadcast %cst_21 : f32 to vector<8x128xf32>
      %31 = arith.addf %29, %30 : vector<8x128xf32>
      %32 = arith.mulf %31, %27 : vector<8x128xf32>
      %cst_22 = arith.constant 1.42141378 : f32
      %33 = vector.broadcast %cst_22 : f32 to vector<8x128xf32>
      %34 = arith.addf %32, %33 : vector<8x128xf32>
      %35 = arith.mulf %34, %27 : vector<8x128xf32>
      %cst_23 = arith.constant -0.284496725 : f32
      %36 = vector.broadcast %cst_23 : f32 to vector<8x128xf32>
      %37 = arith.addf %35, %36 : vector<8x128xf32>
      %38 = arith.mulf %37, %27 : vector<8x128xf32>
      %cst_24 = arith.constant 0.254829586 : f32
      %39 = vector.broadcast %cst_24 : f32 to vector<8x128xf32>
      %40 = arith.addf %38, %39 : vector<8x128xf32>
      %41 = arith.mulf %40, %27 : vector<8x128xf32>
      %42 = arith.mulf %21, %21 : vector<8x128xf32>
      %cst_25 = arith.constant 0.000000e+00 : f32
      %43 = vector.broadcast %cst_25 : f32 to vector<8x128xf32>
      %44 = arith.subf %43, %42 : vector<8x128xf32>
      %45 = math.exp %44 : vector<8x128xf32>
      %46 = arith.mulf %41, %45 : vector<8x128xf32>
      %cst_26 = arith.constant 1.000000e+00 : f32
      %47 = vector.broadcast %cst_26 : f32 to vector<8x128xf32>
      %48 = arith.subf %47, %46 : vector<8x128xf32>
      %cst_27 = arith.constant 0.000000e+00 : f32
      %49 = vector.broadcast %cst_27 : f32 to vector<8x128xf32>
      %50 = arith.cmpf olt, %20, %49 : vector<8x128xf32>
      %cst_28 = arith.constant 0.000000e+00 : f32
      %51 = vector.broadcast %cst_28 : f32 to vector<8x128xf32>
      %52 = arith.subf %51, %48 : vector<8x128xf32>
      %53 = arith.select %50, %52, %48 : vector<8x128xi1>, vector<8x128xf32>
      %cst_29 = arith.constant 1.000000e+00 : f32
      %54 = vector.broadcast %cst_29 : f32 to vector<8x128xf32>
      %55 = arith.addf %54, %53 : vector<8x128xf32>
      %56 = arith.mulf %18, %55 : vector<8x128xf32>
      %c0_30 = arith.constant 0 : index
      %c0_31 = arith.constant 0 : index
      %57 = vector.load %arg5[%c0_30, %c0_31] : memref<128x128xbf16, #tpu.memory_space<vmem>>, vector<128x128xbf16>
      %c0_32 = arith.constant 0 : index
      %c0_33 = arith.constant 0 : index
      %58 = vector.load %arg6[%c0_32, %c0_33] : memref<1x128xf32, #tpu.memory_space<vmem>>, vector<1x128xf32>
      %59 = arith.truncf %56 : vector<8x128xf32> to vector<8x128xbf16>
      %cst_34 = arith.constant dense<0.000000e+00> : vector<8x128xf32>
      %60 = tpu.matmul %59, %57, %cst_34 {dimension_numbers = #tpu.dot_dimension_numbers<[1], [0], [0], [1], [0, 0, 1, 1], [], []>} : vector<8x128xbf16>, vector<128x128xbf16>, vector<8x128xf32> -> vector<8x128xf32>
      %61 = vector.broadcast %58 : vector<1x128xf32> to vector<8x128xf32>
      %62 = arith.addf %60, %61 : vector<8x128xf32>
      %cst_35 = arith.constant 5.000000e-01 : f32
      %63 = vector.broadcast %cst_35 : f32 to vector<8x128xf32>
      %64 = arith.mulf %63, %62 : vector<8x128xf32>
      %cst_36 = arith.constant 0.707106769 : f32
      %65 = vector.broadcast %cst_36 : f32 to vector<8x128xf32>
      %66 = arith.mulf %62, %65 : vector<8x128xf32>
      %67 = math.absf %66 : vector<8x128xf32>
      %cst_37 = arith.constant 0.327591091 : f32
      %68 = vector.broadcast %cst_37 : f32 to vector<8x128xf32>
      %69 = arith.mulf %68, %67 : vector<8x128xf32>
      %cst_38 = arith.constant 1.000000e+00 : f32
      %70 = vector.broadcast %cst_38 : f32 to vector<8x128xf32>
      %71 = arith.addf %70, %69 : vector<8x128xf32>
      %cst_39 = arith.constant 1.000000e+00 : f32
      %72 = vector.broadcast %cst_39 : f32 to vector<8x128xf32>
      %73 = arith.divf %72, %71 : vector<8x128xf32>
      %cst_40 = arith.constant 1.06140542 : f32
      %74 = vector.broadcast %cst_40 : f32 to vector<8x128xf32>
      %75 = arith.mulf %74, %73 : vector<8x128xf32>
      %cst_41 = arith.constant -1.45315206 : f32
      %76 = vector.broadcast %cst_41 : f32 to vector<8x128xf32>
      %77 = arith.addf %75, %76 : vector<8x128xf32>
      %78 = arith.mulf %77, %73 : vector<8x128xf32>
      %cst_42 = arith.constant 1.42141378 : f32
      %79 = vector.broadcast %cst_42 : f32 to vector<8x128xf32>
      %80 = arith.addf %78, %79 : vector<8x128xf32>
      %81 = arith.mulf %80, %73 : vector<8x128xf32>
      %cst_43 = arith.constant -0.284496725 : f32
      %82 = vector.broadcast %cst_43 : f32 to vector<8x128xf32>
      %83 = arith.addf %81, %82 : vector<8x128xf32>
      %84 = arith.mulf %83, %73 : vector<8x128xf32>
      %cst_44 = arith.constant 0.254829586 : f32
      %85 = vector.broadcast %cst_44 : f32 to vector<8x128xf32>
      %86 = arith.addf %84, %85 : vector<8x128xf32>
      %87 = arith.mulf %86, %73 : vector<8x128xf32>
      %88 = arith.mulf %67, %67 : vector<8x128xf32>
      %cst_45 = arith.constant 0.000000e+00 : f32
      %89 = vector.broadcast %cst_45 : f32 to vector<8x128xf32>
      %90 = arith.subf %89, %88 : vector<8x128xf32>
      %91 = math.exp %90 : vector<8x128xf32>
      %92 = arith.mulf %87, %91 : vector<8x128xf32>
      %cst_46 = arith.constant 1.000000e+00 : f32
      %93 = vector.broadcast %cst_46 : f32 to vector<8x128xf32>
      %94 = arith.subf %93, %92 : vector<8x128xf32>
      %cst_47 = arith.constant 0.000000e+00 : f32
      %95 = vector.broadcast %cst_47 : f32 to vector<8x128xf32>
      %96 = arith.cmpf olt, %66, %95 : vector<8x128xf32>
      %cst_48 = arith.constant 0.000000e+00 : f32
      %97 = vector.broadcast %cst_48 : f32 to vector<8x128xf32>
      %98 = arith.subf %97, %94 : vector<8x128xf32>
      %99 = arith.select %96, %98, %94 : vector<8x128xi1>, vector<8x128xf32>
      %cst_49 = arith.constant 1.000000e+00 : f32
      %100 = vector.broadcast %cst_49 : f32 to vector<8x128xf32>
      %101 = arith.addf %100, %99 : vector<8x128xf32>
      %102 = arith.mulf %64, %101 : vector<8x128xf32>
      %c0_50 = arith.constant 0 : index
      %c0_51 = arith.constant 0 : index
      %103 = vector.load %arg7[%c0_50, %c0_51] : memref<128x64xbf16, #tpu.memory_space<vmem>>, vector<128x64xbf16>
      %c0_52 = arith.constant 0 : index
      %c0_53 = arith.constant 0 : index
      %104 = vector.load %arg8[%c0_52, %c0_53] : memref<1x64xf32, #tpu.memory_space<vmem>>, vector<1x64xf32>
      %105 = arith.truncf %102 : vector<8x128xf32> to vector<8x128xbf16>
      %cst_54 = arith.constant dense<0.000000e+00> : vector<8x64xf32>
      %106 = tpu.matmul %105, %103, %cst_54 {dimension_numbers = #tpu.dot_dimension_numbers<[1], [0], [0], [1], [0, 0, 1, 1], [], []>} : vector<8x128xbf16>, vector<128x64xbf16>, vector<8x64xf32> -> vector<8x64xf32>
      %107 = vector.broadcast %104 : vector<1x64xf32> to vector<8x64xf32>
      %108 = arith.addf %106, %107 : vector<8x64xf32>
      %109 = arith.mulf %108, %108 : vector<8x64xf32>
      %cst_55 = arith.constant dense<0.000000e+00> : vector<8xf32>
      %110 = vector.multi_reduction <add>, %109, %cst_55 [1] : vector<8x64xf32> to vector<8xf32>
      %111 = vector.shape_cast %110 : vector<8xf32> to vector<8x1xf32>
      %cst_56 = arith.constant 1.000000e-24 : f32
      %112 = vector.broadcast %cst_56 : f32 to vector<8x1xf32>
      %113 = arith.maximumf %111, %112 : vector<8x1xf32>
      %114 = math.rsqrt %113 : vector<8x1xf32>
      %115 = vector.broadcast %114 : vector<8x1xf32> to vector<8x64xf32>
      %116 = arith.mulf %108, %115 : vector<8x64xf32>
      %117 = arith.truncf %116 : vector<8x64xf32> to vector<8x64xbf16>
      %c0_57 = arith.constant 0 : index
      %c0_58 = arith.constant 0 : index
      %118 = vector.load %arg12[%c0_57, %c0_58] : memref<8x64xbf16, #tpu.memory_space<vmem>>, vector<8x64xbf16>
      tpu.vector_store %arg12[%c0_57, %c0_58], %117 {strides = array<i32>} : memref<8x64xbf16, #tpu.memory_space<vmem>>, vector<8x64xbf16>,
    } else {
    }
    %c0 = arith.constant 0 : index
    %c0_1 = arith.constant 0 : index
    %3 = vector.load %arg12[%c0, %c0_1] : memref<8x64xbf16, #tpu.memory_space<vmem>>, vector<8x64xbf16>
    %c0_2 = arith.constant 0 : index
    %c0_3 = arith.constant 0 : index
    %4 = vector.load %arg9[%c0_2, %c0_3] : memref<64x256xbf16, #tpu.memory_space<vmem>>, vector<64x256xbf16>
    %cst = arith.constant dense<0.000000e+00> : vector<8x256xf32>
    %5 = tpu.matmul %3, %4, %cst {dimension_numbers = #tpu.dot_dimension_numbers<[1], [0], [0], [1], [0, 0, 1, 1], [], []>} : vector<8x64xbf16>, vector<64x256xbf16>, vector<8x256xf32> -> vector<8x256xf32>
    %c0_4 = arith.constant 0 : index
    %c0_5 = arith.constant 0 : index
    %6 = vector.load %arg10[%c0_4, %c0_5] : memref<1x256xf32, #tpu.memory_space<vmem>>, vector<1x256xf32>
    %7 = vector.broadcast %6 : vector<1x256xf32> to vector<8x256xf32>
    %8 = arith.mulf %5, %7 : vector<8x256xf32>
    %c0_6 = arith.constant 0 : index
    %c0_7 = arith.constant 0 : index
    %9 = vector.load %arg11[%c0_6, %c0_7] : memref<8x256xf32, #tpu.memory_space<vmem>>, vector<8x256xf32>
    tpu.vector_store %arg11[%c0_6, %c0_7], %8 {strides = array<i32>} : memref<8x256xf32, #tpu.memory_space<vmem>>, vector<8x256xf32>,
    return
  }
  func.func @transform_0(%arg0: i32, %arg1: i32) -> (i32, i32) {
    %c0_i32 = arith.constant 0 : i32
    %c0_i32_0 = arith.constant 0 : i32
    return %arg0, %c0_i32 : i32, i32
  }
  func.func @transform_1(%arg0: i32, %arg1: i32) -> (i32, i32) {
    %c0_i32 = arith.constant 0 : i32
    %c0_i32_0 = arith.constant 0 : i32
    %c0_i32_1 = arith.constant 0 : i32
    return %c0_i32, %c0_i32_0 : i32, i32
  }
  func.func @transform_2(%arg0: i32, %arg1: i32) -> (i32, i32) {
    %c0_i32 = arith.constant 0 : i32
    %c0_i32_0 = arith.constant 0 : i32
    %c0_i32_1 = arith.constant 0 : i32
    return %c0_i32, %c0_i32_0 : i32, i32
  }
  func.func @transform_3(%arg0: i32, %arg1: i32) -> (i32, i32) {
    %c0_i32 = arith.constant 0 : i32
    %c0_i32_0 = arith.constant 0 : i32
    %c0_i32_1 = arith.constant 0 : i32
    return %c0_i32, %c0_i32_0 : i32, i32
  }
  func.func @transform_4(%arg0: i32, %arg1: i32) -> (i32, i32) {
    %c0_i32 = arith.constant 0 : i32
    %c0_i32_0 = arith.constant 0 : i32
    %c0_i32_1 = arith.constant 0 : i32
    return %c0_i32, %c0_i32_0 : i32, i32
  }
  func.func @transform_5(%arg0: i32, %arg1: i32) -> (i32, i32) {
    %c0_i32 = arith.constant 0 : i32
    %c0_i32_0 = arith.constant 0 : i32
    %c0_i32_1 = arith.constant 0 : i32
    return %c0_i32, %c0_i32_0 : i32, i32
  }
  func.func @transform_6(%arg0: i32, %arg1: i32) -> (i32, i32) {
    %c0_i32 = arith.constant 0 : i32
    %c0_i32_0 = arith.constant 0 : i32
    %c0_i32_1 = arith.constant 0 : i32
    return %c0_i32, %c0_i32_0 : i32, i32
  }
  func.func @transform_7(%arg0: i32, %arg1: i32) -> (i32, i32) {
    %c0_i32 = arith.constant 0 : i32
    %c0_i32_0 = arith.constant 0 : i32
    return %c0_i32, %arg1 : i32, i32
  }
  func.func @transform_8(%arg0: i32, %arg1: i32) -> (i32, i32) {
    %c0_i32 = arith.constant 0 : i32
    %c0_i32_0 = arith.constant 0 : i32
    return %c0_i32, %arg1 : i32, i32
  }
  func.func @transform_9(%arg0: i32, %arg1: i32) -> (i32, i32) {
    %c0_i32 = arith.constant 0 : i32
    return %arg0, %arg1 : i32, i32
  }
}

</mosaic_0001>

<llo_original>
// kernel: tpu_custom_call.1
$region0: #{tpu_custom_call.1}
  #allocation0 [shape = 'u32[]', space=smem, size = 0x4, offset = 0x4, fixed_abs, tag = 'smem constant byte address 0x4 - core index']
  #allocation1 [shape = 'u32[144,128]{1,0:T(1,128)}', space=vmem, size = 0x12000, scoped, tag = 'internal scratch']
  #allocation2 [shape = 'bf16[8,64]{1,0:T(8,128)(2,1)}', space=vmem, size = 0x800, scoped, tag = 'scratch operand']
  %s0 = inlined_call_operand.hbm [shape: f32[16,64], index: 0, kind: input, shape index: {}]
  %s1 = inlined_call_operand.vmem [shape: bf16[64,128], index: 1, kind: input, shape index: {}]
  %s2 = inlined_call_operand.vmem [shape: f32[1,128], index: 2, kind: input, shape index: {}]
  %s3 = inlined_call_operand.vmem [shape: bf16[128,128], index: 3, kind: input, shape index: {}]
  %s4 = inlined_call_operand.vmem [shape: f32[1,128], index: 4, kind: input, shape index: {}]
  %s5 = inlined_call_operand.vmem [shape: bf16[128,64], index: 5, kind: input, shape index: {}]
  %s6 = inlined_call_operand.vmem [shape: f32[1,64], index: 6, kind: input, shape index: {}]
  %s7 = inlined_call_operand.hbm [shape: bf16[64,512], index: 7, kind: input, shape index: {}]
  %s8 = inlined_call_operand.vmem [shape: f32[1,512], index: 8, kind: input, shape index: {}]
  %s9 = inlined_call_operand.hbm [shape: f32[16,512], index: 9, kind: output, shape index: {}]
  %s10 = sld [smem:[#allocation0]]
  $region81: #{tpu_custom_call.1} parent=0
    _
  %s12 = ssub.s32 1, %s10
  %s13 = scalar_select 0, %s12, %s10
  $region1: #{tpu_custom_call.1} parent=0
    #allocation3 [shape = 'u8[8192]{0}', space=vmem, size = 0x2000, scoped, tag = 'input window, operand 0']
    #allocation4 [shape = 's32[2]{0}', space=sflag, size = 0x8, scoped, tag = 'scoped memory for tpu_custom_call.1']
    #allocation5 [shape = 's32[2]{0}', space=sflag, size = 0x8, scoped, tag = 'scoped memory for tpu_custom_call.1']
    #allocation6 [shape = 'u8[65536]{0}', space=vmem, size = 0x10000, scoped, tag = 'input window, operand 7']
    #allocation7 [shape = 's32[2]{0}', space=sflag, size = 0x8, scoped, tag = 'scoped memory for tpu_custom_call.1']
    #allocation8 [shape = 'u8[16384]{0}', space=vmem, size = 0x4000, scoped, tag = 'output window, operand 0']
    %14 = vsyncpa [#allocation4], 0
    %s15 = scalar_lea.sflag [#allocation4], 1
    %16 = vsyncpa %s15, 0
    %17 = vsyncpa [#allocation7], 0
    %s18 = scalar_lea.sflag [#allocation7], 1
    %19 = vsyncpa %s18, 0
    %20 = vsyncpa [#allocation5], 0
    %s21 = scalar_lea.sflag [#allocation5], 1
    %22 = vsyncpa %s21, 0
    loop: start=0, step=1, limit=6
    $region2: #{tpu_custom_call.1} parent=1 // loop_pre_header
      _
    $region3: #{tpu_custom_call.1} parent=1 // loop_header
      %s24 = sphi 0, %s28
      %p25 = scmp.ge.s32.totalorder %s24, 6
      %s31 = sphi 0, %s43
      %s32 = sphi 0, %s39
      %s33 = sphi 0, %s31
      %s34 = sphi 0, %s32
      %s35 = sphi 0, %s33
      %s36 = sphi 0, %s34
      %s46 = sphi 0, %s48
      %s49 = sphi 0, %s46
      %s50 = sphi 0, %s49
      %s66 = sphi 0, %s50
      %s70 = sphi 0, %s70
      %s72 = sphi 0, %s70
      %s73 = sphi 0, %s72
      %s87 = sphi 0, %s73
      %s91 = sphi 0, %s91
      %s93 = sphi 0, %s91
      %s94 = sphi 0, %s93
      %s108 = sphi 0, %s94
      %s112 = sphi 0, %s112
      %s114 = sphi 0, %s112
      %s115 = sphi 0, %s114
      %s129 = sphi 0, %s115
      %s133 = sphi 0, %s133
      %s135 = sphi 0, %s133
      %s136 = sphi 0, %s135
      %s150 = sphi 0, %s136
      %s154 = sphi 0, %s154
      %s156 = sphi 0, %s154
      %s157 = sphi 0, %s156
      %s171 = sphi 0, %s157
      %s175 = sphi 0, %s175
      %s177 = sphi 0, %s175
      %s178 = sphi 0, %s177
      %s192 = sphi 0, %s178
      %s198 = sphi 0, %s200
      %s201 = sphi 0, %s198
      %s202 = sphi 0, %s201
      %s218 = sphi 0, %s202
      %s224 = sphi 0, %s226
      %s227 = sphi 0, %s224
      %s228 = sphi 0, %s227
      %s244 = sphi 0, %s228
      %s252 = sphi 0, %s254
      %s255 = sphi 0, %s252
      %s256 = sphi 0, %s255
      %s272 = sphi 0, %s256
    $region4: #{tpu_custom_call.1} parent=1 // loop_header_branch
      %27 = sbr.rel (%p25) target = $region8
    $region5: #{tpu_custom_call.1} parent=1 // loop_body
      %s29 = ssub.s32 %s24, 1
      %s30 = ssub.s32 %s24, 2
      %s37 = sadd.s32 1, %s32
      %p38 = scmp.ge.s32.totalorder %s37, 2
      %s39 = scalar_select %p38, 0, %s37
      %s40 = sadd.s32 1, %s31
      %s41 = scalar_select %p38, %s40, %s31
      %p42 = scmp.ge.s32.totalorder %s41, 2
      %s43 = scalar_select %p42, 0, %s41
      %s44 = ssub.s32 %s31, %s43
      %p45 = scmp.eq.s32.totalorder %s44, 0
      %s47 = sadd.s32 %s46, 1
      %s48 = scalar_select %p45, %s46, %s47
      %p51 = pneg %p45
      %p52 = scmp.eq.s32.totalorder %s24, 3
      %p53 = por %p51, %p52
      %p54 = scmp.ne.s32.totalorder %s46, %s49
      %p55 = scmp.eq.s32.totalorder %s24, 0
      %p56 = por %p54, %p55
      %p57 = scmp.ne.s32.totalorder %s46, %s49
      %p58 = scmp.eq.s32.totalorder %s29, 3
      %p59 = por %p57, %p58
      %p60 = scmp.ne.s32.totalorder %s49, %s50
      %p61 = scmp.eq.s32.totalorder %s29, 0
      %p62 = por %p60, %p61
      %p63 = scmp.ne.s32.totalorder %s49, %s50
      %p64 = scmp.eq.s32.totalorder %s30, 3
      %p65 = por %p63, %p64
      %p67 = scmp.ne.s32.totalorder %s50, %s66
      %p68 = scmp.eq.s32.totalorder %s30, 0
      %p69 = por %p67, %p68
      %s71 = sadd.s32 %s70, 1
      %p74 = scmp.eq.s32.totalorder %s24, 3
      %p75 = scmp.ne.s32.totalorder %s70, %s72
      %p76 = scmp.eq.s32.totalorder %s24, 0
      %p77 = por %p75, %p76
      %p78 = scmp.ne.s32.totalorder %s70, %s72
      %p79 = scmp.eq.s32.totalorder %s29, 3
      %p80 = por %p78, %p79
      %p81 = scmp.ne.s32.totalorder %s72, %s73
      %p82 = scmp.eq.s32.totalorder %s29, 0
      %p83 = por %p81, %p82
      %p84 = scmp.ne.s32.totalorder %s72, %s73
      %p85 = scmp.eq.s32.totalorder %s30, 3
      %p86 = por %p84, %p85
      %p88 = scmp.ne.s32.totalorder %s73, %s87
      %p89 = scmp.eq.s32.totalorder %s30, 0
      %p90 = por %p88, %p89
      %s92 = sadd.s32 %s91, 1
      %p95 = scmp.eq.s32.totalorder %s24, 3
      %p96 = scmp.ne.s32.totalorder %s91, %s93
      %p97 = scmp.eq.s32.totalorder %s24, 0
      %p98 = por %p96, %p97
      %p99 = scmp.ne.s32.totalorder %s91, %s93
      %p100 = scmp.eq.s32.totalorder %s29, 3
      %p101 = por %p99, %p100
      %p102 = scmp.ne.s32.totalorder %s93, %s94
      %p103 = scmp.eq.s32.totalorder %s29, 0
      %p104 = por %p102, %p103
      %p105 = scmp.ne.s32.totalorder %s93, %s94
      %p106 = scmp.eq.s32.totalorder %s30, 3
      %p107 = por %p105, %p106
      %p109 = scmp.ne.s32.totalorder %s94, %s108
      %p110 = scmp.eq.s32.totalorder %s30, 0
      %p111 = por %p109, %p110
      %s113 = sadd.s32 %s112, 1
      %p116 = scmp.eq.s32.totalorder %s24, 3
      %p117 = scmp.ne.s32.totalorder %s112, %s114
      %p118 = scmp.eq.s32.totalorder %s24, 0
      %p119 = por %p117, %p118
      %p120 = scmp.ne.s32.totalorder %s112, %s114
      %p121 = scmp.eq.s32.totalorder %s29, 3
      %p122 = por %p120, %p121
      %p123 = scmp.ne.s32.totalorder %s114, %s115
      %p124 = scmp.eq.s32.totalorder %s29, 0
      %p125 = por %p123, %p124
      %p126 = scmp.ne.s32.totalorder %s114, %s115
      %p127 = scmp.eq.s32.totalorder %s30, 3
      %p128 = por %p126, %p127
      %p130 = scmp.ne.s32.totalorder %s115, %s129
      %p131 = scmp.eq.s32.totalorder %s30, 0
      %p132 = por %p130, %p131
      %s134 = sadd.s32 %s133, 1
      %p137 = scmp.eq.s32.totalorder %s24, 3
      %p138 = scmp.ne.s32.totalorder %s133, %s135
      %p139 = scmp.eq.s32.totalorder %s24, 0
      %p140 = por %p138, %p139
      %p141 = scmp.ne.s32.totalorder %s133, %s135
      %p142 = scmp.eq.s32.totalorder %s29, 3
      %p143 = por %p141, %p142
      %p144 = scmp.ne.s32.totalorder %s135, %s136
      %p145 = scmp.eq.s32.totalorder %s29, 0
      %p146 = por %p144, %p145
      %p147 = scmp.ne.s32.totalorder %s135, %s136
      %p148 = scmp.eq.s32.totalorder %s30, 3
      %p149 = por %p147, %p148
      %p151 = scmp.ne.s32.totalorder %s136, %s150
      %p152 = scmp.eq.s32.totalorder %s30, 0
      %p153 = por %p151, %p152
      %s155 = sadd.s32 %s154, 1
      %p158 = scmp.eq.s32.totalorder %s24, 3
      %p159 = scmp.ne.s32.totalorder %s154, %s156
      %p160 = scmp.eq.s32.totalorder %s24, 0
      %p161 = por %p159, %p160
      %p162 = scmp.ne.s32.totalorder %s154, %s156
      %p163 = scmp.eq.s32.totalorder %s29, 3
      %p164 = por %p162, %p163
      %p165 = scmp.ne.s32.totalorder %s156, %s157
      %p166 = scmp.eq.s32.totalorder %s29, 0
      %p167 = por %p165, %p166
      %p168 = scmp.ne.s32.totalorder %s156, %s157
      %p169 = scmp.eq.s32.totalorder %s30, 3
      %p170 = por %p168, %p169
      %p172 = scmp.ne.s32.totalorder %s157, %s171
      %p173 = scmp.eq.s32.totalorder %s30, 0
      %p174 = por %p172, %p173
      %s176 = sadd.s32 %s175, 1
      %p179 = scmp.eq.s32.totalorder %s24, 3
      %p180 = scmp.ne.s32.totalorder %s175, %s177
      %p181 = scmp.eq.s32.totalorder %s24, 0
      %p182 = por %p180, %p181
      %p183 = scmp.ne.s32.totalorder %s175, %s177
      %p184 = scmp.eq.s32.totalorder %s29, 3
      %p185 = por %p183, %p184
      %p186 = scmp.ne.s32.totalorder %s177, %s178
      %p187 = scmp.eq.s32.totalorder %s29, 0
      %p188 = por %p186, %p187
      %p189 = scmp.ne.s32.totalorder %s177, %s178
      %p190 = scmp.eq.s32.totalorder %s30, 3
      %p191 = por %p189, %p190
      %p193 = scmp.ne.s32.totalorder %s178, %s192
      %p194 = scmp.eq.s32.totalorder %s30, 0
      %p195 = por %p193, %p194
      %s196 = ssub.s32 %s32, %s39
      %p197 = scmp.eq.s32.totalorder %s196, 0
      %s199 = sadd.s32 %s198, 1
      %s200 = scalar_select %p197, %s198, %s199
      %p203 = pneg %p197
      %p204 = scmp.eq.s32.totalorder %s24, 3
      %p205 = por %p203, %p204
      %p206 = scmp.ne.s32.totalorder %s198, %s201
      %p207 = scmp.eq.s32.totalorder %s24, 0
      %p208 = por %p206, %p207
      %p209 = scmp.ne.s32.totalorder %s198, %s201
      %p210 = scmp.eq.s32.totalorder %s29, 3
      %p211 = por %p209, %p210
      %p212 = scmp.ne.s32.totalorder %s201, %s202
      %p213 = scmp.eq.s32.totalorder %s29, 0
      %p214 = por %p212, %p213
      %p215 = scmp.ne.s32.totalorder %s201, %s202
      %p216 = scmp.eq.s32.totalorder %s30, 3
      %p217 = por %p215, %p216
      %p219 = scmp.ne.s32.totalorder %s202, %s218
      %p220 = scmp.eq.s32.totalorder %s30, 0
      %p221 = por %p219, %p220
      %s222 = ssub.s32 %s32, %s39
      %p223 = scmp.eq.s32.totalorder %s222, 0
      %s225 = sadd.s32 %s224, 1
      %s226 = scalar_select %p223, %s224, %s225
      %p229 = pneg %p223
      %p230 = scmp.eq.s32.totalorder %s24, 3
      %p231 = por %p229, %p230
      %p232 = scmp.ne.s32.totalorder %s224, %s227
      %p233 = scmp.eq.s32.totalorder %s24, 0
      %p234 = por %p232, %p233
      %p235 = scmp.ne.s32.totalorder %s224, %s227
      %p236 = scmp.eq.s32.totalorder %s29, 3
      %p237 = por %p235, %p236
      %p238 = scmp.ne.s32.totalorder %s227, %s228
      %p239 = scmp.eq.s32.totalorder %s29, 0
      %p240 = por %p238, %p239
      %p241 = scmp.ne.s32.totalorder %s227, %s228
      %p242 = scmp.eq.s32.totalorder %s30, 3
      %p243 = por %p241, %p242
      %p245 = scmp.ne.s32.totalorder %s228, %s244
      %p246 = scmp.eq.s32.totalorder %s30, 0
      %p247 = por %p245, %p246
      %s248 = ssub.s32 %s31, %s43
      %s249 = ssub.s32 %s32, %s39
      %s250 = sor.u32 %s248, %s249
      %p251 = scmp.eq.s32.totalorder %s250, 0
      %s253 = sadd.s32 %s252, 1
      %s254 = scalar_select %p251, %s252, %s253
      %p257 = pneg %p251
      %p258 = scmp.eq.s32.totalorder %s24, 3
      %p259 = por %p257, %p258
      %p260 = scmp.ne.s32.totalorder %s252, %s255
      %p261 = scmp.eq.s32.totalorder %s24, 0
      %p262 = por %p260, %p261
      %p263 = scmp.ne.s32.totalorder %s252, %s255
      %p264 = scmp.eq.s32.totalorder %s29, 3
      %p265 = por %p263, %p264
      %p266 = scmp.ne.s32.totalorder %s255, %s256
      %p267 = scmp.eq.s32.totalorder %s29, 0
      %p268 = por %p266, %p267
      %p269 = scmp.ne.s32.totalorder %s255, %s256
      %p270 = scmp.eq.s32.totalorder %s30, 3
      %p271 = por %p269, %p270
      %p273 = scmp.ne.s32.totalorder %s256, %s272
      %p274 = scmp.eq.s32.totalorder %s30, 0
      %p275 = por %p273, %p274
      %p276 = scmp.le.s32.totalorder 1, %s24
      %p277 = scmp.lt.s32.totalorder %s24, 5
      %p278 = pnand %p276, %p277
      %p279 = pneg %p278
      // Predicated region
      $region9: #{tpu_custom_call.1} parent=5 // pred_check
        _
      $region10: #{tpu_custom_call.1} parent=5 // pred_check_branch
        %281 = sbr.rel (%p278) target = $region12
      $region11: #{tpu_custom_call.1} parent=5 // pred_region
        %s282 = ssub.s32 %s24, 1
        // Predicated region
        $region13: #{tpu_custom_call.1} parent=11 // pred_check
          %p283 = pneg %p83
        $region14: #{tpu_custom_call.1} parent=11 // pred_check_branch
          %285 = sbr.rel (%p283) target = $region16
        $region15: #{tpu_custom_call.1} parent=11 // pred_region
          _
        $region16: #{tpu_custom_call.1} parent=11 // pred_fallthru
          _
        // Predicated region
        $region17: #{tpu_custom_call.1} parent=11 // pred_check
          %p286 = pneg %p104
        $region18: #{tpu_custom_call.1} parent=11 // pred_check_branch
          %288 = sbr.rel (%p286) target = $region20
        $region19: #{tpu_custom_call.1} parent=11 // pred_region
          _
        $region20: #{tpu_custom_call.1} parent=11 // pred_fallthru
          _
        // Predicated region
        $region21: #{tpu_custom_call.1} parent=11 // pred_check
          %p289 = pneg %p125
        $region22: #{tpu_custom_call.1} parent=11 // pred_check_branch
          %291 = sbr.rel (%p289) target = $region24
        $region23: #{tpu_custom_call.1} parent=11 // pred_region
          _
        $region24: #{tpu_custom_call.1} parent=11 // pred_fallthru
          _
        // Predicated region
        $region25: #{tpu_custom_call.1} parent=11 // pred_check
          %p292 = pneg %p146
        $region26: #{tpu_custom_call.1} parent=11 // pred_check_branch
          %294 = sbr.rel (%p292) target = $region28
        $region27: #{tpu_custom_call.1} parent=11 // pred_region
          _
        $region28: #{tpu_custom_call.1} parent=11 // pred_fallthru
          _
        // Predicated region
        $region29: #{tpu_custom_call.1} parent=11 // pred_check
          %p295 = pneg %p167
        $region30: #{tpu_custom_call.1} parent=11 // pred_check_branch
          %297 = sbr.rel (%p295) target = $region32
        $region31: #{tpu_custom_call.1} parent=11 // pred_region
          _
        $region32: #{tpu_custom_call.1} parent=11 // pred_fallthru
          _
        // Predicated region
        $region33: #{tpu_custom_call.1} parent=11 // pred_check
          %p298 = pneg %p188
        $region34: #{tpu_custom_call.1} parent=11 // pred_check_branch
          %300 = sbr.rel (%p298) target = $region36
        $region35: #{tpu_custom_call.1} parent=11 // pred_region
          _
        $region36: #{tpu_custom_call.1} parent=11 // pred_fallthru
          _
      $region12: #{tpu_custom_call.1} parent=5 // pred_fallthru
        _
      %p301 = scmp.lt.s32.totalorder %s24, 4
      // Predicated region
      $region37: #{tpu_custom_call.1} parent=5 // pred_check
        %p302 = pneg %p301
      $region38: #{tpu_custom_call.1} parent=5 // pred_check_branch
        %304 = sbr.rel (%p302) target = $region40
      $region39: #{tpu_custom_call.1} parent=5 // pred_region
        // Predicated region
        $region41: #{tpu_custom_call.1} parent=39 // pred_check
          %p305 = pneg %p56
        $region42: #{tpu_custom_call.1} parent=39 // pred_check_branch
          %307 = sbr.rel (%p305) target = $region44
        $region43: #{tpu_custom_call.1} parent=39 // pred_region
          %s308 = sand.u32 %s46, 1
          %s309 = scalar_lea.sflag [#allocation4], %s308
          %s310 = sand.u32 %s46, 1
          %s311 = smul.addr %s310, 8
          %s312 = scalar_lea.vmem [#allocation3], %s311
          %s314 = ssub.s32 128, 128
          %315 = vsyncadd %s309, %s314
          %s316 = smul.addr %s31, 128
          %s317 = scalar_lea.hbm %s0, %s316
          %s319 = sshll.u32 %s312, 4
          %s320 = int_to_ptr.vmem [resolvable:$true] %s319
          %322 = dma.hbm_to_vmem [thread:$0]  %s317, 128, %s320, %s309
        $region44: #{tpu_custom_call.1} parent=39 // pred_fallthru
          _
        // Predicated region
        $region45: #{tpu_custom_call.1} parent=39 // pred_check
          %p323 = pneg %p208
        $region46: #{tpu_custom_call.1} parent=39 // pred_check_branch
          %325 = sbr.rel (%p323) target = $region48
        $region47: #{tpu_custom_call.1} parent=39 // pred_region
          %s326 = sand.u32 %s198, 1
          %s327 = scalar_lea.sflag [#allocation7], %s326
          %s328 = sand.u32 %s198, 1
          %s329 = smul.addr %s328, 64
          %s330 = scalar_lea.vmem [#allocation6], %s329
          %s331 = smul.u32 2, %s32
          %s333 = ssub.s32 1024, 1024
          %334 = vsyncadd %s327, %s333
          %s335 = smul.addr %s331, 64
          %s336 = scalar_lea.hbm %s7, %s335
          %s337 = sshll.u32 %s330, 4
          %s338 = int_to_ptr.vmem [resolvable:$true] %s337
          %343 = dma.hbm_to_vmem [thread:$0]  %s336, 1024, %s338, %s327, 256, 128, 8
        $region48: #{tpu_custom_call.1} parent=39 // pred_fallthru
          _
        // Predicated region
        $region49: #{tpu_custom_call.1} parent=39 // pred_check
          %p344 = pneg %p234
        $region50: #{tpu_custom_call.1} parent=39 // pred_check_branch
          %346 = sbr.rel (%p344) target = $region52
        $region51: #{tpu_custom_call.1} parent=39 // pred_region
          %s347 = smul.u32 2, %s32
          %p348 = scmp.lt.s32.totalorder %s347, 3
          %s349 = scalar_select %p348, %s347, 3
          %s350 = scalar_lea.vmem %s8, %s349
          %s351 = smul.u32 2, %s32
        $region52: #{tpu_custom_call.1} parent=39 // pred_fallthru
          _
      $region40: #{tpu_custom_call.1} parent=5 // pred_fallthru
        _
      %p352 = scmp.le.s32.totalorder 1, %s24
      %p353 = scmp.lt.s32.totalorder %s24, 5
      %p354 = pnand %p352, %p353
      %p355 = pneg %p354
      // Predicated region
      $region53: #{tpu_custom_call.1} parent=5 // pred_check
        _
      $region54: #{tpu_custom_call.1} parent=5 // pred_check_branch
        %357 = sbr.rel (%p354) target = $region56
      $region55: #{tpu_custom_call.1} parent=5 // pred_region
        %s358 = ssub.s32 %s24, 1
        %s359 = sand.u32 %s49, 1
        %s360 = scalar_lea.sflag [#allocation4], %s359
        %s361 = sand.u32 %s49, 1
        %s362 = smul.addr %s361, 8
        %s363 = scalar_lea.vmem [#allocation3], %s362
        // Predicated region
        $region57: #{tpu_custom_call.1} parent=55 // pred_check
          %p364 = pneg %p62
        $region58: #{tpu_custom_call.1} parent=55 // pred_check_branch
          %366 = sbr.rel (%p364) target = $region60
        $region59: #{tpu_custom_call.1} parent=55 // pred_region
          %367 = dma.done %s360, 128
        $region60: #{tpu_custom_call.1} parent=55 // pred_fallthru
          _
        %s368 = sand.u32 %s201, 1
        %s369 = scalar_lea.sflag [#allocation7], %s368
        %s370 = sand.u32 %s201, 1
        %s371 = smul.addr %s370, 64
        %s372 = scalar_lea.vmem [#allocation6], %s371
        // Predicated region
        $region61: #{tpu_custom_call.1} parent=55 // pred_check
          %p373 = pneg %p214
        $region62: #{tpu_custom_call.1} parent=55 // pred_check_branch
          %375 = sbr.rel (%p373) target = $region64
        $region63: #{tpu_custom_call.1} parent=55 // pred_region
          %376 = dma.done %s369, 1024
        $region64: #{tpu_custom_call.1} parent=55 // pred_fallthru
          _
        %s377 = sand.u32 %s49, 1
        %s378 = scalar_lea.sflag [#allocation4], %s377
        %s379 = sand.u32 %s49, 1
        %s380 = smul.addr %s379, 8
        %s381 = scalar_lea.vmem [#allocation3], %s380
        %p382 = pneg %p62
        %p383 = pneg %p59
        %p384 = pneg %p83
        %p385 = pneg %p80
        %p386 = pneg %p104
        %p387 = pneg %p101
        %p388 = pneg %p125
        %p389 = pneg %p122
        %p390 = pneg %p146
        %p391 = pneg %p143
        %p392 = pneg %p167
        %p393 = pneg %p164
        %p394 = pneg %p188
        %p395 = pneg %p185
        %s396 = sand.u32 %s201, 1
        %s397 = scalar_lea.sflag [#allocation7], %s396
        %s398 = sand.u32 %s201, 1
        %s399 = smul.addr %s398, 64
        %s400 = scalar_lea.vmem [#allocation6], %s399
        %p401 = pneg %p214
        %p402 = pneg %p211
        %s403 = smul.u32 2, %s34
        %p404 = scmp.lt.s32.totalorder %s403, 3
        %s405 = scalar_select %p404, %s403, 3
        %s406 = scalar_lea.vmem %s8, %s405
        %p407 = pneg %p240
        %p408 = pneg %p237
        %p409 = pneg %p268
        %p410 = pneg %p265
        %s411 = sand.u32 %s255, 1
        %s412 = scalar_lea.sflag [#allocation5], %s411
        %s413 = sand.u32 %s255, 1
        %s414 = smul.addr %s413, 16
        %s415 = scalar_lea.vmem [#allocation8], %s414
        %s416 = smul.u32 2, %s34
        %s417 = smul.u32 2, %s34
        %p418 = scmp.lt.s32.totalorder %s417, 3
        %s419 = scalar_select %p418, %s417, 3
        %s420 = scalar_lea.vmem %s8, %s419
        %s421 = smul.u32 2, %s34
        %s422 = smul.u32 2, %s34
        %p424 = scmp.eq.s32.totalorder %s34, 0
        // Predicated region
        $region65: #{tpu_custom_call.1} parent=55 // pred_check
          %p425 = pneg %p424
        $region66: #{tpu_custom_call.1} parent=55 // pred_check_branch
          %427 = sbr.rel (%p425) target = $region68
        $region67: #{tpu_custom_call.1} parent=55 // pred_region
          %v428 = vld [vmem:[%s363] sm:$0xff]
          %v429 = vld [vmem:[%s1] sm:$0xf]
          %v430 = vld [vmem:[%s1 + $0x4] sm:$0xf]
          %v431 = vld [vmem:[%s1 + $0x8] sm:$0xf]
          %v432 = vld [vmem:[%s1 + $0xc] sm:$0xf]
          %v433 = vld [vmem:[%s1 + $0x10] sm:$0xf]
          %v434 = vld [vmem:[%s1 + $0x14] sm:$0xf]
          %v435 = vld [vmem:[%s1 + $0x18] sm:$0xf]
          %v436 = vld [vmem:[%s1 + $0x1c] sm:$0xf]
          %v437 = vld [vmem:[%s2] sm:$0x1]
          %v438 = vpack.c.bf16 %v428, %v428
          %v440 = vlaneseq
          %v441 = vshrl.u32 %v440, 7
          %v442 = vsub.s32 0, %v441
          %v443 = vrot.slane %v437, %v442
          %v453 = vunpack.c.l.b16 %v429
          %v454 = vunpack.c.l.b16 %v430
          %v455 = vunpack.c.l.b16 %v431
          %v456 = vunpack.c.l.b16 %v432
          %v457 = vunpack.c.l.b16 %v433
          %v458 = vunpack.c.l.b16 %v434
          %v459 = vunpack.c.l.b16 %v435
          %v460 = vunpack.c.l.b16 %v436
          %v461 = vpack.c.b16 %v454, %v453
          %v462 = vpack.c.b16 %v456, %v455
          %v463 = vpack.c.b16 %v458, %v457
          %v464 = vpack.c.b16 %v460, %v459
          %vm469 = vcmask 523264
          %v471 = vsel %vm469, %v438, 0
          %473 = vmatprep.subr.bf16.mxu0 0
          %474 = vmatpush1.bf16.msra.mxu0 %v461
          %475 = vmatprep.subr.bf16.mxu0 0
          %476 = vmatpush1.bf16.msra.mxu0 %v462
          %477 = vmatprep.subr.bf16.mxu0 0
          %478 = vmatpush1.bf16.msra.mxu0 %v463
          %479 = vmatprep.subr.bf16.mxu0 0
          %480 = vmatpush1.bf16.msra.mxu0 %v464
          %481 = vmatprep.subr.bf16.mxu0 0
          %482 = vmatpush1.bf16.msra.mxu0 0
          %483 = vmatprep.subr.bf16.mxu0 0
          %484 = vmatpush1.bf16.msra.mxu0 0
          %485 = vmatprep.subr.bf16.mxu0 0
          %486 = vmatpush1.bf16.msra.mxu0 0
          %487 = vmatprep.subr.bf16.mxu0 0
          %488 = vmatpush1.bf16.msra.mxu0 0
          %489 = vmatprep.subr.bf16.mxu0 0
          %490 = vmatpush1.bf16.msra.mxu0 0
          %491 = vmatprep.subr.bf16.mxu0 0
          %492 = vmatpush1.bf16.msra.mxu0 0
          %493 = vmatprep.subr.bf16.mxu0 0
          %494 = vmatpush1.bf16.msra.mxu0 0
          %495 = vmatprep.subr.bf16.mxu0 0
          %496 = vmatpush1.bf16.msra.mxu0 0
          %497 = vmatprep.subr.bf16.mxu0 0
          %498 = vmatpush1.bf16.msra.mxu0 0
          %499 = vmatprep.subr.bf16.mxu0 0
          %500 = vmatpush1.bf16.msra.mxu0 0
          %501 = vmatprep.subr.bf16.mxu0 0
          %502 = vmatpush1.bf16.msra.mxu0 0
          %503 = vmatprep.subr.bf16.mxu0 0
          %504 = vmatpush1.bf16.msra.mxu0 0
          %505 = vmatprep.mubr.bf16.mxu0 0
          %506 = vmatmul.mubr.bf16.gmra.mrb[0].mxu0 %v471
          %v507 = vpop.f32.mrb[0].mxu0
          %v508 = vadd.f32 %v443, %v507
          %v509 = vpop.f32.mrb[0].mxu0
          %v510 = vpop.f32.mrb[0].mxu0
          %v511 = vpop.f32.mrb[0].mxu0
          %512 = vdwg.mxu0
          %v513 = vmul.f32 %v508, 0.5
          %v514 = vmul.f32 %v508, 0.70710677
          %v515 = vand.u32 2147483647, %v514
          %v516 = vmul.f32 %v515, 0.3275911
          %v517 = vadd.f32 %v516, 1.0
          %v518 = vrcp.pop %v517
          %v519 = vmul.f32 1.0, %v518
          %v520 = vmul.f32 %v519, 1.0614054
          %v521 = vadd.f32 %v520, -1.4531521
          %v522 = vmul.f32 %v521, %v519
          %v523 = vadd.f32 %v522, 1.4214138
          %v524 = vmul.f32 %v523, %v519
          %v525 = vadd.f32 %v524, -0.28449672
          %v526 = vmul.f32 %v525, %v519
          %v527 = vadd.f32 %v526, 0.2548296
          %v528 = vmul.f32 %v527, %v519
          %v529 = vmul.f32 %v515, %v515
          %v530 = vsub.f32 0.0, %v529
          %v531 = vmul.f32 %v530, 1.442695
          %v532 = vpow.pop %v531
          %v533 = vmul.f32 %v528, %v532
          %v534 = vsub.f32 1.0, %v533
          %vm535 = vcmp.lt.f32.partialorder %v514, 0.0
          %v536 = vsub.f32 0.0, %v534
          %v537 = vsel %vm535, %v536, %v534
          %v538 = vadd.f32 %v537, 1.0
          %v539 = vmul.f32 %v513, %v538
          %v540 = vld [vmem:[%s3] sm:$0xf]
          %v541 = vld [vmem:[%s3 + $0x4] sm:$0xf]
          %v542 = vld [vmem:[%s3 + $0x8] sm:$0xf]
          %v543 = vld [vmem:[%s3 + $0xc] sm:$0xf]
          %v544 = vld [vmem:[%s3 + $0x10] sm:$0xf]
          %v545 = vld [vmem:[%s3 + $0x14] sm:$0xf]
          %v546 = vld [vmem:[%s3 + $0x18] sm:$0xf]
          %v547 = vld [vmem:[%s3 + $0x1c] sm:$0xf]
          %v548 = vld [vmem:[%s3 + $0x20] sm:$0xf]
          %v549 = vld [vmem:[%s3 + $0x24] sm:$0xf]
          %v550 = vld [vmem:[%s3 + $0x28] sm:$0xf]
          %v551 = vld [vmem:[%s3 + $0x2c] sm:$0xf]
          %v552 = vld [vmem:[%s3 + $0x30] sm:$0xf]
          %v553 = vld [vmem:[%s3 + $0x34] sm:$0xf]
          %v554 = vld [vmem:[%s3 + $0x38] sm:$0xf]
          %v555 = vld [vmem:[%s3 + $0x3c] sm:$0xf]
          %v556 = vld [vmem:[%s4] sm:$0x1]
          %v557 = vpack.c.bf16 %v539, %v539
          %v559 = vlaneseq
          %v560 = vshrl.u32 %v559, 7
          %v561 = vsub.s32 0, %v560
          %v562 = vrot.slane %v556, %v561
          %v580 = vunpack.c.l.b16 %v540
          %v581 = vunpack.c.l.b16 %v541
          %v582 = vunpack.c.l.b16 %v542
          %v583 = vunpack.c.l.b16 %v543
          %v584 = vunpack.c.l.b16 %v544
          %v585 = vunpack.c.l.b16 %v545
          %v586 = vunpack.c.l.b16 %v546
          %v587 = vunpack.c.l.b16 %v547
          %v588 = vunpack.c.l.b16 %v548
          %v589 = vunpack.c.l.b16 %v549
          %v590 = vunpack.c.l.b16 %v550
          %v591 = vunpack.c.l.b16 %v551
          %v592 = vunpack.c.l.b16 %v552
          %v593 = vunpack.c.l.b16 %v553
          %v594 = vunpack.c.l.b16 %v554
          %v595 = vunpack.c.l.b16 %v555
          %v596 = vpack.c.b16 %v581, %v580
          %v597 = vpack.c.b16 %v583, %v582
          %v598 = vpack.c.b16 %v585, %v584
          %v599 = vpack.c.b16 %v587, %v586
          %v600 = vpack.c.b16 %v589, %v588
          %v601 = vpack.c.b16 %v591, %v590
          %v602 = vpack.c.b16 %v593, %v592
          %v603 = vpack.c.b16 %v595, %v594
          %612 = vmatprep.subr.bf16.mxu0 0
          %613 = vmatpush1.bf16.msra.mxu0 %v596
          %614 = vmatprep.subr.bf16.mxu0 0
          %615 = vmatpush1.bf16.msra.mxu0 %v597
          %616 = vmatprep.subr.bf16.mxu0 0
          %617 = vmatpush1.bf16.msra.mxu0 %v598
          %618 = vmatprep.subr.bf16.mxu0 0
          %619 = vmatpush1.bf16.msra.mxu0 %v599
          %620 = vmatprep.subr.bf16.mxu0 0
          %621 = vmatpush1.bf16.msra.mxu0 %v600
          %622 = vmatprep.subr.bf16.mxu0 0
          %623 = vmatpush1.bf16.msra.mxu0 %v601
          %624 = vmatprep.subr.bf16.mxu0 0
          %625 = vmatpush1.bf16.msra.mxu0 %v602
          %626 = vmatprep.subr.bf16.mxu0 0
          %627 = vmatpush1.bf16.msra.mxu0 %v603
          %628 = vmatprep.subr.bf16.mxu0 0
          %629 = vmatpush1.bf16.msra.mxu0 0
          %630 = vmatprep.subr.bf16.mxu0 0
          %631 = vmatpush1.bf16.msra.mxu0 0
          %632 = vmatprep.subr.bf16.mxu0 0
          %633 = vmatpush1.bf16.msra.mxu0 0
          %634 = vmatprep.subr.bf16.mxu0 0
          %635 = vmatpush1.bf16.msra.mxu0 0
          %636 = vmatprep.subr.bf16.mxu0 0
          %637 = vmatpush1.bf16.msra.mxu0 0
          %638 = vmatprep.subr.bf16.mxu0 0
          %639 = vmatpush1.bf16.msra.mxu0 0
          %640 = vmatprep.subr.bf16.mxu0 0
          %641 = vmatpush1.bf16.msra.mxu0 0
          %642 = vmatprep.subr.bf16.mxu0 0
          %643 = vmatpush1.bf16.msra.mxu0 0
          %644 = vmatprep.mubr.bf16.mxu0 0
          %645 = vmatmul.mubr.bf16.gmra.mrb[0].mxu0 %v557
          %v646 = vpop.f32.mrb[0].mxu0
          %v647 = vadd.f32 %v562, %v646
          %v648 = vpop.f32.mrb[0].mxu0
          %v649 = vpop.f32.mrb[0].mxu0
          %v650 = vpop.f32.mrb[0].mxu0
          %651 = vdwg.mxu0
          %v652 = vmul.f32 %v647, 0.5
          %v653 = vmul.f32 %v647, 0.70710677
          %v654 = vand.u32 2147483647, %v653
          %v655 = vmul.f32 %v654, 0.3275911
          %v656 = vadd.f32 %v655, 1.0
          %v657 = vrcp.pop %v656
          %v658 = vmul.f32 1.0, %v657
          %v659 = vmul.f32 %v658, 1.0614054
          %v660 = vadd.f32 %v659, -1.4531521
          %v661 = vmul.f32 %v660, %v658
          %v662 = vadd.f32 %v661, 1.4214138
          %v663 = vmul.f32 %v662, %v658
          %v664 = vadd.f32 %v663, -0.28449672
          %v665 = vmul.f32 %v664, %v658
          %v666 = vadd.f32 %v665, 0.2548296
          %v667 = vmul.f32 %v666, %v658
          %v668 = vmul.f32 %v654, %v654
          %v669 = vsub.f32 0.0, %v668
          %v670 = vmul.f32 %v669, 1.442695
          %v671 = vpow.pop %v670
          %v672 = vmul.f32 %v667, %v671
          %v673 = vsub.f32 1.0, %v672
          %vm674 = vcmp.lt.f32.partialorder %v653, 0.0
          %v675 = vsub.f32 0.0, %v673
          %v676 = vsel %vm674, %v675, %v673
          %v677 = vadd.f32 %v676, 1.0
          %v678 = vmul.f32 %v652, %v677
          %v679 = vld [vmem:[%s5] sm:$0xf]
          %v680 = vld [vmem:[%s5 + $0x4] sm:$0xf]
          %v681 = vld [vmem:[%s5 + $0x8] sm:$0xf]
          %v682 = vld [vmem:[%s5 + $0xc] sm:$0xf]
          %v683 = vld [vmem:[%s5 + $0x10] sm:$0xf]
          %v684 = vld [vmem:[%s5 + $0x14] sm:$0xf]
          %v685 = vld [vmem:[%s5 + $0x18] sm:$0xf]
          %v686 = vld [vmem:[%s5 + $0x1c] sm:$0xf]
          %v687 = vld [vmem:[%s5 + $0x20] sm:$0xf]
          %v688 = vld [vmem:[%s5 + $0x24] sm:$0xf]
          %v689 = vld [vmem:[%s5 + $0x28] sm:$0xf]
          %v690 = vld [vmem:[%s5 + $0x2c] sm:$0xf]
          %v691 = vld [vmem:[%s5 + $0x30] sm:$0xf]
          %v692 = vld [vmem:[%s5 + $0x34] sm:$0xf]
          %v693 = vld [vmem:[%s5 + $0x38] sm:$0xf]
          %v694 = vld [vmem:[%s5 + $0x3c] sm:$0xf]
          %v695 = vld [vmem:[%s6] sm:$0x1]
          %v696 = vpack.c.bf16 %v678, %v678
          %v698 = vlaneseq
          %v699 = vshrl.u32 %v698, 7
          %v700 = vsub.s32 0, %v699
          %v701 = vrot.slane %v695, %v700
          %v719 = vunpack.c.l.b16 %v679
          %v720 = vunpack.c.l.b16 %v680
          %v721 = vunpack.c.l.b16 %v681
          %v722 = vunpack.c.l.b16 %v682
          %v723 = vunpack.c.l.b16 %v683
          %v724 = vunpack.c.l.b16 %v684
          %v725 = vunpack.c.l.b16 %v685
          %v726 = vunpack.c.l.b16 %v686
          %v727 = vunpack.c.l.b16 %v687
          %v728 = vunpack.c.l.b16 %v688
          %v729 = vunpack.c.l.b16 %v689
          %v730 = vunpack.c.l.b16 %v690
          %v731 = vunpack.c.l.b16 %v691
          %v732 = vunpack.c.l.b16 %v692
          %v733 = vunpack.c.l.b16 %v693
          %v734 = vunpack.c.l.b16 %v694
          %v735 = vpack.c.b16 %v720, %v719
          %v736 = vpack.c.b16 %v722, %v721
          %v737 = vpack.c.b16 %v724, %v723
          %v738 = vpack.c.b16 %v726, %v725
          %v739 = vpack.c.b16 %v728, %v727
          %v740 = vpack.c.b16 %v730, %v729
          %v741 = vpack.c.b16 %v732, %v731
          %v742 = vpack.c.b16 %v734, %v733
          %751 = vmatprep.subr.bf16.mxu0 0
          %752 = vmatpush1.bf16.msra.mxu0 %v735
          %753 = vmatprep.subr.bf16.mxu0 0
          %754 = vmatpush1.bf16.msra.mxu0 %v736
          %755 = vmatprep.subr.bf16.mxu0 0
          %756 = vmatpush1.bf16.msra.mxu0 %v737
          %757 = vmatprep.subr.bf16.mxu0 0
          %758 = vmatpush1.bf16.msra.mxu0 %v738
          %759 = vmatprep.subr.bf16.mxu0 0
          %760 = vmatpush1.bf16.msra.mxu0 %v739
          %761 = vmatprep.subr.bf16.mxu0 0
          %762 = vmatpush1.bf16.msra.mxu0 %v740
          %763 = vmatprep.subr.bf16.mxu0 0
          %764 = vmatpush1.bf16.msra.mxu0 %v741
          %765 = vmatprep.subr.bf16.mxu0 0
          %766 = vmatpush1.bf16.msra.mxu0 %v742
          %767 = vmatprep.subr.bf16.mxu0 0
          %768 = vmatpush1.bf16.msra.mxu0 0
          %769 = vmatprep.subr.bf16.mxu0 0
          %770 = vmatpush1.bf16.msra.mxu0 0
          %771 = vmatprep.subr.bf16.mxu0 0
          %772 = vmatpush1.bf16.msra.mxu0 0
          %773 = vmatprep.subr.bf16.mxu0 0
          %774 = vmatpush1.bf16.msra.mxu0 0
          %775 = vmatprep.subr.bf16.mxu0 0
          %776 = vmatpush1.bf16.msra.mxu0 0
          %777 = vmatprep.subr.bf16.mxu0 0
          %778 = vmatpush1.bf16.msra.mxu0 0
          %779 = vmatprep.subr.bf16.mxu0 0
          %780 = vmatpush1.bf16.msra.mxu0 0
          %781 = vmatprep.subr.bf16.mxu0 0
          %782 = vmatpush1.bf16.msra.mxu0 0
          %783 = vmatprep.mubr.bf16.mxu0 0
          %784 = vmatmul.mubr.bf16.gmra.mrb[0].mxu0 %v696
          %v785 = vpop.f32.mrb[0].mxu0
          %v786 = vadd.f32 %v701, %v785
          %v787 = vpop.f32.mrb[0].mxu0
          %v788 = vpop.f32.mrb[0].mxu0
          %v789 = vpop.f32.mrb[0].mxu0
          %790 = vdwg.mxu0
          %v791 = vmul.f32 %v786, %v786
          %v792 = vsel %vm469, %v791, 0.0
          %793 = vadd.xlane.f32.xlu0 %v792
          %v794 = vpop.xlane.xlu0 %793
          %v795 = vmax.f32 %v794, 1e-24
          %v796 = vrsqrt.pop %v795
          %v797 = vmul.f32 %v786, %v796
          %v798 = vpack.c.bf16 %v797, %v797
          %vm799 = vcmask 519168
          %800 = vst.msk [vmem:[#allocation2] sm:$0xf] %vm799, %v798
        $region68: #{tpu_custom_call.1} parent=55 // pred_fallthru
          _
        %v801 = vld [vmem:[#allocation2] sm:$0xf]
        %v802 = vld [vmem:[%s372] sm:$0xff]
        %v803 = vld [vmem:[%s372 + $0x8] sm:$0xff]
        %v804 = vld [vmem:[%s372 + $0x10] sm:$0xff]
        %v805 = vld [vmem:[%s372 + $0x18] sm:$0xff]
        %v806 = vld [vmem:[%s372 + $0x20] sm:$0xff]
        %v807 = vld [vmem:[%s372 + $0x28] sm:$0xff]
        %v808 = vld [vmem:[%s372 + $0x30] sm:$0xff]
        %v809 = vld [vmem:[%s372 + $0x38] sm:$0xff]
        %v818 = vunpack.c.l.b16 %v802
        %v819 = vunpack.c.h.b16 %v802
        %v820 = vunpack.c.l.b16 %v803
        %v821 = vunpack.c.h.b16 %v803
        %v822 = vunpack.c.l.b16 %v804
        %v823 = vunpack.c.h.b16 %v804
        %v824 = vunpack.c.l.b16 %v805
        %v825 = vunpack.c.h.b16 %v805
        %v826 = vunpack.c.l.b16 %v806
        %v827 = vunpack.c.h.b16 %v806
        %v828 = vunpack.c.l.b16 %v807
        %v829 = vunpack.c.h.b16 %v807
        %v830 = vunpack.c.l.b16 %v808
        %v831 = vunpack.c.h.b16 %v808
        %v832 = vunpack.c.l.b16 %v809
        %v833 = vunpack.c.h.b16 %v809
        %v834 = vpack.c.b16 %v820, %v818
        %v835 = vpack.c.b16 %v821, %v819
        %v836 = vpack.c.b16 %v824, %v822
        %v837 = vpack.c.b16 %v825, %v823
        %v838 = vpack.c.b16 %v828, %v826
        %v839 = vpack.c.b16 %v829, %v827
        %v840 = vpack.c.b16 %v832, %v830
        %v841 = vpack.c.b16 %v833, %v831
        %vm850 = vcmask 523264
        %v852 = vsel %vm850, %v801, 0
        %854 = vmatprep.subr.bf16.mxu0 %v835
        %855 = vmatpush1.bf16.msra.mxu0 %v834
        %856 = vmatprep.subr.bf16.mxu0 %v837
        %857 = vmatpush1.bf16.msra.mxu0 %v836
        %858 = vmatprep.subr.bf16.mxu0 %v839
        %859 = vmatpush1.bf16.msra.mxu0 %v838
        %860 = vmatprep.subr.bf16.mxu0 %v841
        %861 = vmatpush1.bf16.msra.mxu0 %v840
        %862 = vmatprep.subr.bf16.mxu0 0
        %863 = vmatpush1.bf16.msra.mxu0 0
        %864 = vmatprep.subr.bf16.mxu0 0
        %865 = vmatpush1.bf16.msra.mxu0 0
        %866 = vmatprep.subr.bf16.mxu0 0
        %867 = vmatpush1.bf16.msra.mxu0 0
        %868 = vmatprep.subr.bf16.mxu0 0
        %869 = vmatpush1.bf16.msra.mxu0 0
        %870 = vmatprep.subr.bf16.mxu0 0
        %871 = vmatpush1.bf16.msra.mxu0 0
        %872 = vmatprep.subr.bf16.mxu0 0
        %873 = vmatpush1.bf16.msra.mxu0 0
        %874 = vmatprep.subr.bf16.mxu0 0
        %875 = vmatpush1.bf16.msra.mxu0 0
        %876 = vmatprep.subr.bf16.mxu0 0
        %877 = vmatpush1.bf16.msra.mxu0 0
        %878 = vmatprep.subr.bf16.mxu0 0
        %879 = vmatpush1.bf16.msra.mxu0 0
        %880 = vmatprep.subr.bf16.mxu0 0
        %881 = vmatpush1.bf16.msra.mxu0 0
        %882 = vmatprep.subr.bf16.mxu0 0
        %883 = vmatpush1.bf16.msra.mxu0 0
        %884 = vmatprep.subr.bf16.mxu0 0
        %885 = vmatpush1.bf16.msra.mxu0 0
        %886 = vmatprep.mubr.bf16.mxu0 0
        %887 = vmatmul.mubr.bf16.gmra.mrb[0].mxu0 %v852
        %v888 = vpop.f32.mrb[0].mxu0
        %v889 = vadd.f32 0.0, %v888
        %v890 = vpop.f32.mrb[0].mxu0
        %v891 = vadd.f32 0.0, %v890
        %v892 = vpop.f32.mrb[0].mxu0
        %v893 = vpop.f32.mrb[0].mxu0
        %894 = vdwg.mxu0
        %v895 = vld [vmem:[%s420] sm:$0x3]
        %v897 = vlaneseq
        %v898 = vshrl.u32 %v897, 7
        %v899 = vsub.s32 0, %v898
        %v900 = vrot.slane %v895, %v899
        %v901 = vlaneseq
        %v902 = vshrl.u32 %v901, 7
        %v903 = vsub.s32 1, %v902
        %v904 = vrot.slane %v895, %v903
        %v907 = vmul.f32 %v889, %v900
        %v908 = vmul.f32 %v891, %v904
        %909 = vst [vmem:[%s415] sm:$0xff] %v907
        %910 = vst [vmem:[%s415 + $0x8] sm:$0xff] %v908
        %s911 = sand.u32 %s255, 1
        %s912 = scalar_lea.sflag [#allocation5], %s911
        %s913 = sand.u32 %s255, 1
        %s914 = smul.addr %s913, 16
        %s915 = scalar_lea.vmem [#allocation8], %s914
        // Predicated region
        $region69: #{tpu_custom_call.1} parent=55 // pred_check
          %p916 = pneg %p265
        $region70: #{tpu_custom_call.1} parent=55 // pred_check_branch
          %918 = sbr.rel (%p916) target = $region72
        $region71: #{tpu_custom_call.1} parent=55 // pred_region
          %s919 = smul.u32 2, %s34
          %s921 = ssub.s32 256, 256
          %922 = vsyncadd %s912, %s921
          %s923 = smul.addr %s33, 4
          %s924 = sadd.s32 %s919, %s923
          %s925 = smul.addr %s924, 128
          %s926 = scalar_lea.hbm %s9, %s925
          %s928 = sshll.u32 %s915, 4
          %s929 = int_to_ptr.vmem [resolvable:$true] %s928
          %931 = dma.vmem_to_hbm [thread:$0]  %s929, 256, %s926, %s912
        $region72: #{tpu_custom_call.1} parent=55 // pred_fallthru
          _
      $region56: #{tpu_custom_call.1} parent=5 // pred_fallthru
        _
      %p932 = scmp.le.s32.totalorder 2, %s24
      // Predicated region
      $region73: #{tpu_custom_call.1} parent=5 // pred_check
        %p933 = pneg %p932
      $region74: #{tpu_custom_call.1} parent=5 // pred_check_branch
        %935 = sbr.rel (%p933) target = $region76
      $region75: #{tpu_custom_call.1} parent=5 // pred_region
        %s936 = ssub.s32 %s24, 2
        // Predicated region
        $region77: #{tpu_custom_call.1} parent=75 // pred_check
          %p937 = pneg %p271
        $region78: #{tpu_custom_call.1} parent=75 // pred_check_branch
          %939 = sbr.rel (%p937) target = $region80
        $region79: #{tpu_custom_call.1} parent=75 // pred_region
          %s940 = sand.u32 %s256, 1
          %s941 = scalar_lea.sflag [#allocation5], %s940
          %s942 = sand.u32 %s256, 1
          %s943 = smul.addr %s942, 16
          %s944 = scalar_lea.vmem [#allocation8], %s943
          %945 = dma.done %s941, 256
        $region80: #{tpu_custom_call.1} parent=75 // pred_fallthru
          _
      $region76: #{tpu_custom_call.1} parent=5 // pred_fallthru
        _
    $region6: #{tpu_custom_call.1} parent=1 // loop_footer
      %s28 = sadd.s32 1, %s24
    $region7: #{tpu_custom_call.1} parent=1 // loop_footer_branch
      %23 = sbr.rel target = $region3
    $region8: #{tpu_custom_call.1} parent=1 // loop_exit
      _
    %946 = vsyncpa [#allocation4], 1
    %s947 = scalar_lea.sflag [#allocation4], 1
    %948 = vsyncpa %s947, 1
    %949 = vsyncpa [#allocation7], 1
    %s950 = scalar_lea.sflag [#allocation7], 1
    %951 = vsyncpa %s950, 1
    %952 = vsyncpa [#allocation5], 1
    %s953 = scalar_lea.sflag [#allocation5], 1
    %954 = vsyncpa %s953, 1

</llo_original>
